<compile_context>
chip_gen: v5e
topology: v5e:2x2
jax: 0.10.0
libtpu: 0.0.40
codegen_flags: <defaults>
</compile_context>

<pallas_src>
import functools

import jax
import jax.numpy as jnp
from jax.experimental import pallas as pl
from jax.experimental.pallas import tpu as pltpu

GAMMA = 2.0
SIZE_AVERAGE = True


def _focal_loss_kernel(logits_ref, targets_ref, alpha_ref, out_ref, *,
                       n_total, gamma):
    i = pl.program_id(0)

    x = logits_ref[...].astype(jnp.float32)        # (C, TILE_N)
    ids = targets_ref[...]                         # (1, TILE_N) int32
    a = alpha_ref[...].astype(jnp.float32)         # (C, 1)

    c, tn = x.shape

    # Validity mask for padded lanes of the last tile (true sample count).
    lane = jax.lax.broadcasted_iota(jnp.int32, (1, tn), 1)
    valid = (i * tn + lane) < n_total              # (1, TILE_N) bool

    # Per-sample (= per-lane) log-softmax of the target class.
    m = jnp.max(x, axis=0, keepdims=True)                    # (1, TILE_N)
    denom = jnp.sum(jnp.exp(x - m), axis=0, keepdims=True)   # (1, TILE_N)

    # One-hot class mask via iota == target (equivalent of scatter_).
    row = jax.lax.broadcasted_iota(jnp.int32, (c, tn), 0)
    class_mask = (row == ids).astype(jnp.float32)            # (C, TILE_N)

    x_tgt = jnp.sum(x * class_mask, axis=0, keepdims=True)   # (1, TILE_N)
    log_p = x_tgt - m - jnp.log(denom)                       # (1, TILE_N)
    probs = jnp.exp(log_p)                                   # (1, TILE_N)

    alpha_t = jnp.sum(a * class_mask, axis=0, keepdims=True)  # (1, TILE_N)

    one_minus = 1.0 - probs
    if gamma == 2.0:
        focal_w = one_minus * one_minus    # strength-reduced pow: VPU only
    elif gamma == 1.0:
        focal_w = one_minus
    elif gamma == 0.0:
        focal_w = jnp.ones_like(one_minus)
    else:
        focal_w = jnp.power(jnp.maximum(one_minus, 0.0), jnp.float32(gamma))

    loss = -alpha_t * focal_w * log_p      # (1, TILE_N) per-sample loss

    # Mask BEFORE reducing (padded lanes of the last tile carry garbage),
    # then collapse to a single per-tile partial sum.  The mem-bound kernel
    # has XLU slack, so the lane reduction is effectively free.
    tile_sum = jnp.sum(jnp.where(valid, loss, 0.0))          # scalar f32

    # Broadcast-store one tiny lane-dense (1, 8, 128) block per tile; the
    # wrapper reads element [i, 0, 0].  This replaces 4N bytes of per-sample
    # HBM writeback with ~4 KiB per grid step.
    out_ref[...] = jnp.full(out_ref.shape, tile_sum, dtype=jnp.float32)


def _round_up(x, m):
    return ((x + m - 1) // m) * m


def _pick_tile_n(n, c, in_itemsize, max_tile_n):
    """VMEM-budget-driven lane-tile size (multiple of 128)."""
    # Conservative per-lane VMEM accounting: double-buffered logits + targets
    # tiles plus the elementwise body's (C, tile_n) / (1, tile_n) f32
    # temporaries.  Budget kept well under v5e's 16 MiB scoped default even
    # before vmem_limit_bytes is raised; v7x's 64 MiB physical is also safe.
    budget_bytes = 12 * 1024 * 1024
    bytes_per_lane = (2 * c * in_itemsize   # double-buffered logits tile
                      + 2 * 4               # double-buffered targets tile
                      + 8 * c * 4           # (C, tile_n) f32 temporaries
                      + 16 * 4)             # (1, tile_n) f32 temporaries
    budget_tile = max(128, (budget_bytes // bytes_per_lane) // 128 * 128)

    upper = min(budget_tile, max_tile_n, _round_up(n, 128))

    # Aim for >= ~1 MiB of logits per step (hides the ~0.35 us per-step grid
    # overhead), but prefer >= 8 tiles for megacore balance on v7x when N is
    # large enough to afford it.
    min_tile_1mib = _round_up(max(1, (1 << 20) // max(c * in_itemsize, 1)), 128)
    balance_tile = _round_up(pl.cdiv(n, 8), 128)
    desired = max(balance_tile, min_tile_1mib)

    return max(128, min(upper, desired))


def focal_loss(logits, targets, alpha, *, gamma=GAMMA,
               size_average=SIZE_AVERAGE, max_tile_n=65536):
    """logits: (N, C) f32/bf16; targets: (N,) int; alpha: (C,) -> scalar f32."""
    n, c = logits.shape
    in_itemsize = jnp.dtype(logits.dtype).itemsize

    # Lane-dense layout for small C: classes on sublanes, samples on lanes.
    # Input dtype is preserved (bf16 logits halve the dominant HBM read);
    # compute is f32 inside the kernel.
    x_cn = jnp.transpose(logits)                          # (C, N)
    tgt = targets.reshape(1, n).astype(jnp.int32)         # (1, N)
    alpha_col = alpha.reshape(c, 1).astype(jnp.float32)   # (C, 1)

    tile_n = _pick_tile_n(n, c, in_itemsize, max_tile_n)
    num_tiles = pl.cdiv(n, tile_n)

    out_bytes = num_tiles * 8 * 128 * 4
    cost = pl.CostEstimate(
        flops=10 * n * c,
        transcendentals=n * c + 3 * n,
        bytes_accessed=n * c * in_itemsize + 4 * n + 4 * c + out_bytes,
    )

    partials = pl.pallas_call(
        functools.partial(_focal_loss_kernel, n_total=n, gamma=float(gamma)),
        out_shape=jax.ShapeDtypeStruct((num_tiles, 8, 128), jnp.float32),
        grid=(num_tiles,),
        in_specs=[
            # Note: if an xprof trace shows exposed DMA at step boundaries on
            # v7x, add pipeline_mode=pl.Buffered(3) to the logits spec.
            pl.BlockSpec((c, tile_n), lambda i: (0, i)),   # logits tile
            pl.BlockSpec((1, tile_n), lambda i: (0, i)),   # targets tile
            pl.BlockSpec((c, 1), lambda i: (0, 0)),        # alpha: constant block
        ],
        out_specs=pl.BlockSpec((1, 8, 128), lambda i: (i, 0, 0)),
        compiler_params=pltpu.CompilerParams(
            dimension_semantics=("parallel",),
            vmem_limit_bytes=32 * 1024 * 1024),
        cost_estimate=cost,
    )(x_cn, tgt, alpha_col)

    total = jnp.sum(partials[:, 0, 0])   # one exact partial sum per tile
    return total / jnp.float32(n) if size_average else total
    # TODO(synk): for very wide classifiers (C >= a few hundred) also tile C
    # with an online softmax carried in scratch; not needed at these shapes.


def focal_loss_ref(logits, targets, alpha, gamma=GAMMA,
                   size_average=SIZE_AVERAGE):
    p = jax.nn.softmax(logits.astype(jnp.float32), axis=1)
    mask = jax.nn.one_hot(targets, logits.shape[1], dtype=jnp.float32)
    probs = jnp.sum(p * mask, axis=1, keepdims=True)
    log_p = jnp.log(probs)
    alpha_t = alpha[targets].reshape(-1, 1)
    batch_loss = -alpha_t * jnp.power(1.0 - probs, gamma) * log_p
    return jnp.mean(batch_loss) if size_average else jnp.sum(batch_loss)


if __name__ == "__main__":
    N, C = 8, 4  # batch of 8 samples, 4 classes

    key = jax.random.PRNGKey(0)
    k1, k2 = jax.random.split(key)
    logits = jax.random.normal(k1, (N, C), dtype=jnp.float32)
    targets = jax.random.randint(k2, (N,), 0, C, dtype=jnp.int32)
    # Deterministic init matching FocalLoss.__init__(alpha=None): torch.ones(C, 1)
    alpha = jnp.ones((C,), dtype=jnp.float32)

    loss = jax.block_until_ready(focal_loss(logits, targets, alpha))
    ref = jax.block_until_ready(focal_loss_ref(logits, targets, alpha))

    assert jnp.allclose(loss, ref, atol=1e-5, rtol=1e-5), (loss, ref)
    print("KERNEL_OK")
</pallas_src>

<mosaic_0001>
module attributes {stable_mosaic.version = 11 : i64} {
  func.func @_focal_loss_kernel(%arg0: i32, %arg1: memref<4x128xf32, #tpu.memory_space<vmem>>, %arg2: memref<1x128xi32, #tpu.memory_space<vmem>>, %arg3: memref<4x1xf32, #tpu.memory_space<vmem>>, %arg4: memref<1x8x128xf32, #tpu.memory_space<vmem>>) attributes {dimension_semantics = [#tpu.dimension_semantics<parallel>], iteration_bounds = array<i64: 1>, scalar_prefetch = 0 : i64, scratch_operands = 0 : i64, tpu.core_type = #tpu.core_type<tc>, window_params = [{transform_indices = @transform_0, window_bounds = array<i64: 4, 128>}, {transform_indices = @transform_1, window_bounds = array<i64: 1, 128>}, {pipeline_mode = #tpu.pipeline_mode<synchronous>, transform_indices = @transform_2, window_bounds = array<i64: 4, 1>}, {transform_indices = @transform_3, window_bounds = array<i64: 1, 8, 128>}]} {
    %c0 = arith.constant 0 : index
    %c0_0 = arith.constant 0 : index
    %0 = vector.load %arg1[%c0, %c0_0] : memref<4x128xf32, #tpu.memory_space<vmem>>, vector<4x128xf32>
    %c0_1 = arith.constant 0 : index
    %c0_2 = arith.constant 0 : index
    %1 = vector.load %arg2[%c0_1, %c0_2] : memref<1x128xi32, #tpu.memory_space<vmem>>, vector<1x128xi32>
    %c0_3 = arith.constant 0 : index
    %c0_4 = arith.constant 0 : index
    %2 = vector.load %arg3[%c0_3, %c0_4] : memref<4x1xf32, #tpu.memory_space<vmem>>, vector<4x1xf32>
    %3 = tpu.iota {dimensions = array<i32: 1>} : vector<1x128xi32>
    %c128_i32 = arith.constant 128 : i32
    %4 = arith.muli %arg0, %c128_i32 : i32
    %5 = vector.broadcast %4 : i32 to vector<1x128xi32>
    %6 = arith.addi %5, %3 : vector<1x128xi32>
    %c8_i32 = arith.constant 8 : i32
    %7 = vector.broadcast %c8_i32 : i32 to vector<1x128xi32>
    %8 = arith.cmpi slt, %6, %7 : vector<1x128xi32>
    %cst = arith.constant dense<0xFF800000> : vector<128xf32>
    %9 = vector.multi_reduction <maximumf>, %0, %cst [0] : vector<4x128xf32> to vector<128xf32>
    %10 = vector.shape_cast %9 : vector<128xf32> to vector<1x128xf32>
    %11 = vector.broadcast %10 : vector<1x128xf32> to vector<4x128xf32>
    %12 = arith.subf %0, %11 : vector<4x128xf32>
    %13 = math.exp %12 : vector<4x128xf32>
    %cst_5 = arith.constant dense<0.000000e+00> : vector<128xf32>
    %14 = vector.multi_reduction <add>, %13, %cst_5 [0] : vector<4x128xf32> to vector<128xf32>
    %15 = vector.shape_cast %14 : vector<128xf32> to vector<1x128xf32>
    %16 = tpu.iota {dimensions = array<i32: 0>} : vector<4x128xi32>
    %17 = vector.broadcast %1 : vector<1x128xi32> to vector<4x128xi32>
    %18 = arith.cmpi eq, %16, %17 : vector<4x128xi32>
    %19 = arith.extui %18 : vector<4x128xi1> to vector<4x128xi32>
    %20 = arith.sitofp %19 : vector<4x128xi32> to vector<4x128xf32>
    %21 = arith.mulf %0, %20 : vector<4x128xf32>
    %cst_6 = arith.constant dense<0.000000e+00> : vector<128xf32>
    %22 = vector.multi_reduction <add>, %21, %cst_6 [0] : vector<4x128xf32> to vector<128xf32>
    %23 = vector.shape_cast %22 : vector<128xf32> to vector<1x128xf32>
    %24 = arith.subf %23, %10 : vector<1x128xf32>
    %25 = math.log %15 : vector<1x128xf32>
    %26 = arith.subf %24, %25 : vector<1x128xf32>
    %27 = math.exp %26 : vector<1x128xf32>
    %28 = vector.broadcast %2 : vector<4x1xf32> to vector<4x128xf32>
    %29 = arith.mulf %28, %20 : vector<4x128xf32>
    %cst_7 = arith.constant dense<0.000000e+00> : vector<128xf32>
    %30 = vector.multi_reduction <add>, %29, %cst_7 [0] : vector<4x128xf32> to vector<128xf32>
    %31 = vector.shape_cast %30 : vector<128xf32> to vector<1x128xf32>
    %cst_8 = arith.constant 1.000000e+00 : f32
    %32 = vector.broadcast %cst_8 : f32 to vector<1x128xf32>
    %33 = arith.subf %32, %27 : vector<1x128xf32>
    %34 = arith.mulf %33, %33 : vector<1x128xf32>
    %cst_9 = arith.constant 0.000000e+00 : f32
    %35 = vector.broadcast %cst_9 : f32 to vector<1x128xf32>
    %36 = arith.subf %35, %31 : vector<1x128xf32>
    %37 = arith.mulf %36, %34 : vector<1x128xf32>
    %38 = arith.mulf %37, %26 : vector<1x128xf32>
    %cst_10 = arith.constant 0.000000e+00 : f32
    %39 = vector.broadcast %cst_10 : f32 to vector<1x128xf32>
    %40 = arith.select %8, %38, %39 : vector<1x128xi1>, vector<1x128xf32>
    %41 = vector.shape_cast %40 : vector<1x128xf32> to vector<1x1x128xf32>
    %cst_11 = arith.constant dense<0.000000e+00> : vector<1xf32>
    %42 = vector.multi_reduction <add>, %41, %cst_11 [1, 2] : vector<1x1x128xf32> to vector<1xf32>
    %43 = vector.shape_cast %42 : vector<1xf32> to vector<1x1x1xf32>
    %44 = vector.extract %43[0, 0, 0] : f32 from vector<1x1x1xf32>
    %45 = vector.broadcast %44 : f32 to vector<1x8x128xf32>
    %c0_12 = arith.constant 0 : index
    %c0_13 = arith.constant 0 : index
    %c0_14 = arith.constant 0 : index
    %46 = vector.load %arg4[%c0_12, %c0_13, %c0_14] : memref<1x8x128xf32, #tpu.memory_space<vmem>>, vector<1x8x128xf32>
    tpu.vector_store %arg4[%c0_12, %c0_13, %c0_14], %45 {strides = array<i32>} : memref<1x8x128xf32, #tpu.memory_space<vmem>>, vector<1x8x128xf32>,
    return
  }
  func.func @transform_0(%arg0: i32) -> (i32, i32) {
    %c0_i32 = arith.constant 0 : i32
    %c0_i32_0 = arith.constant 0 : i32
    return %c0_i32, %arg0 : i32, i32
  }
  func.func @transform_1(%arg0: i32) -> (i32, i32) {
    %c0_i32 = arith.constant 0 : i32
    %c0_i32_0 = arith.constant 0 : i32
    return %c0_i32, %arg0 : i32, i32
  }
  func.func @transform_2(%arg0: i32) -> (i32, i32) {
    %c0_i32 = arith.constant 0 : i32
    %c0_i32_0 = arith.constant 0 : i32
    %c0_i32_1 = arith.constant 0 : i32
    return %c0_i32, %c0_i32_0 : i32, i32
  }
  func.func @transform_3(%arg0: i32) -> (i32, i32, i32) {
    %c0_i32 = arith.constant 0 : i32
    %c0_i32_0 = arith.constant 0 : i32
    %c0_i32_1 = arith.constant 0 : i32
    return %arg0, %c0_i32, %c0_i32_0 : i32, i32, i32
  }
}

</mosaic_0001>

<llo_original>
// kernel: tpu_custom_call.1
$region0: #{tpu_custom_call.1}
  #allocation0 [shape = 'u32[]', space=smem, size = 0x4, offset = 0x4, fixed_abs, tag = 'smem constant byte address 0x4 - core index']
  #allocation1 [shape = 'u32[72,128]{1,0:T(1,128)}', space=vmem, size = 0x9000, scoped, tag = 'internal scratch']
  %s0 = inlined_call_operand.vmem [shape: f32[4,8], index: 0, kind: input, shape index: {}]
  %s1 = inlined_call_operand.vmem [shape: s32[1,8], index: 1, kind: input, shape index: {}]
  %s2 = inlined_call_operand.vmem [shape: f32[4,1], index: 2, kind: input, shape index: {}]
  %s3 = inlined_call_operand.hbm [shape: f32[1,8,128], index: 3, kind: output, shape index: {}]
  %s4 = sld [smem:[#allocation0]]
  $region22: #{tpu_custom_call.1} parent=0
    _
  %s6 = ssub.s32 1, %s4
  %s7 = scalar_select 0, %s6, %s4
  $region1: #{tpu_custom_call.1} parent=0
    #allocation2 [shape = 'u8[4096]{0}', space=vmem, size = 0x1000, scoped, tag = 'output window, operand 0, single buffered']
    #allocation3 [shape = 's32[1]{0}', space=sflag, size = 0x4, scoped, tag = 'scoped memory for tpu_custom_call.1']
    %8 = vsyncpa [#allocation3], 0
    // Predicated region
    $region2: #{tpu_custom_call.1} parent=1 // pred_check
      _
    $region3: #{tpu_custom_call.1} parent=1 // pred_check_branch
      %10 = sbr.rel (0) target = $region5
    $region4: #{tpu_custom_call.1} parent=1 // pred_region
      _
    $region5: #{tpu_custom_call.1} parent=1 // pred_fallthru
      _
    // Predicated region
    $region6: #{tpu_custom_call.1} parent=1 // pred_check
      _
    $region7: #{tpu_custom_call.1} parent=1 // pred_check_branch
      %12 = sbr.rel (0) target = $region9
    $region8: #{tpu_custom_call.1} parent=1 // pred_region
      _
    $region9: #{tpu_custom_call.1} parent=1 // pred_fallthru
      _
    // Predicated region
    $region10: #{tpu_custom_call.1} parent=1 // pred_check
      _
    $region11: #{tpu_custom_call.1} parent=1 // pred_check_branch
      %14 = sbr.rel (0) target = $region13
    $region12: #{tpu_custom_call.1} parent=1 // pred_region
      _
    $region13: #{tpu_custom_call.1} parent=1 // pred_fallthru
      _
    %v15 = vld [vmem:[%s0] sm:$0xf]
    %v16 = vld [vmem:[%s1] sm:$0x1]
    %v17 = vld [vmem:[%s2] sm:$0xf]
    %v18 = vlaneseq
    %v19 = vand.u32 %v18, 127
    %s20 = smul.u32 0, 128
    %v21 = vstv %s20
    %v22 = vadd.s32 %v21, %v19
    %vm23 = vcmp.lt.s32.totalorder %v22, 8
    %vm24 = vcmask 1043456
    %v25 = vsel %vm24, %v15, -inf
    %v26 = vrot.slane %v25, 4
    %v27 = vmax.f32 %v25, %v26
    %v28 = vrot.slane %v27, 2
    %v29 = vmax.f32 %v27, %v28
    %v30 = vrot.slane %v29, 1
    %v31 = vmax.f32 %v29, %v30
    %v32 = vsub.f32 %v15, %v31
    %v33 = vmul.f32 %v32, 1.442695
    %v34 = vpow.pop %v33
    %v35 = vsel %vm24, %v34, 0.0
    %v36 = vrot.slane %v35, 4
    %v37 = vadd.f32 %v35, %v36
    %v38 = vrot.slane %v37, 2
    %v39 = vadd.f32 %v37, %v38
    %v40 = vrot.slane %v39, 1
    %v41 = vadd.f32 %v39, %v40
    %v42 = vlaneseq
    %v43 = vshrl.u32 %v42, 7
    %v44 = vperm.slane %v16, 0
    %vm45 = vcmp.eq.s32.totalorder %v43, %v44
    %v46 = vsel %vm45, 1, 0
    %v47 = vcvt.s32.f32 %v46
    %v48 = vmul.f32 %v15, %v47
    %v49 = vsel %vm24, %v48, 0.0
    %v50 = vrot.slane %v49, 4
    %v51 = vadd.f32 %v49, %v50
    %v52 = vrot.slane %v51, 2
    %v53 = vadd.f32 %v51, %v52
    %v54 = vrot.slane %v53, 1
    %v55 = vadd.f32 %v53, %v54
    %v56 = vsub.f32 %v55, %v31
    %v57 = vlog2.pop %v41
    %v58 = vmul.f32 %v57, 0.6931472
    %v59 = vsub.f32 %v56, %v58
    %v60 = vmul.f32 %v59, 1.442695
    %v61 = vpow.pop %v60
    %63 = vset.pattern.permute.xlu0 0
    %64 = vperm.xlu0 %63, %v17
    %v65 = vpop.permute.xlu0 %64
    %v67 = vmul.f32 %v65, %v47
    %v68 = vsel %vm24, %v67, 0.0
    %v69 = vrot.slane %v68, 4
    %v70 = vadd.f32 %v68, %v69
    %v71 = vrot.slane %v70, 2
    %v72 = vadd.f32 %v70, %v71
    %v73 = vrot.slane %v72, 1
    %v74 = vadd.f32 %v72, %v73
    %v75 = vsub.f32 1.0, %v61
    %v76 = vmul.f32 %v75, %v75
    %v77 = vsub.f32 0.0, %v74
    %v78 = vmul.f32 %v77, %v76
    %v79 = vmul.f32 %v78, %v59
    %v80 = vsel %vm23, %v79, 0.0
    %vm81 = vcmask 1040384
    %v82 = vsel %vm81, %v80, 0.0
    %83 = vadd.xlane.f32.xlu0 %v82
    %v84 = vpop.xlane.xlu0 %83
    %v85 = vrot.slane %v84, 4
    %v86 = vadd.f32 %v84, %v85
    %v87 = vrot.slane %v86, 2
    %v88 = vadd.f32 %v86, %v87
    %v89 = vrot.slane %v88, 1
    %v90 = vadd.f32 %v88, %v89
    %s91 = vtos %v90
    %v92 = vstv %s91
    %93 = vst [vmem:[#allocation2] sm:$0xff] %v92
    // Predicated region
    $region14: #{tpu_custom_call.1} parent=1 // pred_check
      _
    $region15: #{tpu_custom_call.1} parent=1 // pred_check_branch
      %95 = sbr.rel (0) target = $region17
    $region16: #{tpu_custom_call.1} parent=1 // pred_region
      %97 = vsyncadd [#allocation3], 0
      %s99 = sshll.u32 [#allocation2], 4
      %s100 = int_to_ptr.vmem [resolvable:$true] %s99
      %s101 = sshll.u32 %s3, 4
      %s102 = int_to_ptr.hbm [resolvable:$true] %s101
      %104 = dma.vmem_to_hbm [thread:$0]  %s100, 128, %s102, [#allocation3]
    $region17: #{tpu_custom_call.1} parent=1 // pred_fallthru
      _
    // Predicated region
    $region18: #{tpu_custom_call.1} parent=1 // pred_check
      _
    $region19: #{tpu_custom_call.1} parent=1 // pred_check_branch
      %106 = sbr.rel (0) target = $region21
    $region20: #{tpu_custom_call.1} parent=1 // pred_region
      %108 = dma.done [#allocation3], 128
    $region21: #{tpu_custom_call.1} parent=1 // pred_fallthru
      _
    %109 = vsyncpa [#allocation3], 1

</llo_original>
